<compile_context>
chip_gen: v5e
topology: v5e:2x2
jax: 0.10.0
libtpu: 0.0.40
codegen_flags: <defaults>
</compile_context>

<pallas_src>
import jax
import jax.numpy as jnp
from jax.experimental import pallas as pl
from jax.experimental.pallas import tpu as pltpu


def _round_up(n, m):
    return ((n + m - 1) // m) * m


# ---------------------------------------------------------------------------
# Kernel
# ---------------------------------------------------------------------------
def dqn_kernel(x_ref, w1_ref, b1_ref, w2_ref, b2_ref, w3_ref, b3_ref, o_ref):
    # x_ref: (4, bt) f32.  w1: (24, 4), w2: (32, 24), w3: (3, 32) f32.
    # biases: (out, 1) f32 columns.  o_ref: (3, bt) f32.
    x = x_ref[...]

    # Layer 1 on the MXU (K=4 padding waste is free slack since the MXU is
    # ~99% idle; this removes ~2/3 of the VALU work that bound the old kernel).
    h1 = jnp.dot(w1_ref[...], x, preferred_element_type=jnp.float32)
    h1 = jnp.maximum(h1 + b1_ref[...], 0.0)                    # (24, bt), VPU

    # Layer 2: MXU, f32 operands (no bf16 pack work on the VPU).
    h2 = jnp.dot(w2_ref[...], h1, preferred_element_type=jnp.float32)
    h2 = jnp.maximum(h2 + b2_ref[...], 0.0)                    # (32, bt)

    # Layer 3: Q-values, no activation.
    out = jnp.dot(w3_ref[...], h2, preferred_element_type=jnp.float32)
    o_ref[...] = (out + b3_ref[...]).astype(o_ref.dtype)       # (3, bt), lane-dense


# ---------------------------------------------------------------------------
# Wrappers
# ---------------------------------------------------------------------------
def prep_params(params):
    """One-time conversion of PyTorch-layout params (W (out,in), b (out,)) to
    kernel layout: f32 weights + (out, 1) f32 bias columns. Hoist out of the
    per-step forward call."""
    w1, b1, w2, b2, w3, b3 = params
    return (
        w1.astype(jnp.float32), b1.reshape(-1, 1).astype(jnp.float32),
        w2.astype(jnp.float32), b2.reshape(-1, 1).astype(jnp.float32),
        w3.astype(jnp.float32), b3.reshape(-1, 1).astype(jnp.float32),
    )


def _choose_batch_tile(B, batch_tile, cap=16384):
    """Lane-dense tile: multiple of 128, large enough to amortize per-grid-step
    overhead, small enough for every generation's scoped VMEM, and yielding
    >= 2 grid steps whenever the batch allows (v7x megacore sharding)."""
    if batch_tile is not None:
        assert batch_tile % 128 == 0, "batch_tile must be a multiple of 128"
        return batch_tile
    Bp = _round_up(max(B, 1), 128)
    n_tiles = max(pl.cdiv(Bp, cap), 2 if Bp >= 256 else 1)
    return _round_up(pl.cdiv(Bp, n_tiles), 128)


def dqn_forward_fm(x_fm, prepped_params, *, batch_tile=None):
    """Fast path, feature-major I/O: x_fm (4, B) -> (3, B) float32.
    No wrapper transposes or pads; ragged batches use Pallas boundary blocks
    (out-of-bounds output columns are masked on writeback)."""
    w1, b1, w2, b2, w3, b3 = prepped_params
    feat, B = x_fm.shape
    assert feat == 4
    bt = _choose_batch_tile(B, batch_tile)
    grid = (pl.cdiv(B, bt),)
    n_out = w3.shape[0]

    def resident(a):
        # Full-array block, same tile every grid step -> stays resident in VMEM.
        return pl.BlockSpec(a.shape, lambda i: (0, 0))

    return pl.pallas_call(
        dqn_kernel,
        out_shape=jax.ShapeDtypeStruct((n_out, B), jnp.float32),
        grid=grid,
        in_specs=[
            pl.BlockSpec((4, bt), lambda i: (0, i)),   # x tile, lane-dense batch
            resident(w1), resident(b1),
            resident(w2), resident(b2),
            resident(w3), resident(b3),
        ],
        out_specs=pl.BlockSpec((n_out, bt), lambda i: (0, i)),
        compiler_params=pltpu.CompilerParams(
            dimension_semantics=("parallel",),
            # Covers v5e's 16 MiB default scoped VMEM at 16K-lane tiles with
            # double-buffering; well under physical VMEM on v6e/v7x too.
            vmem_limit_bytes=32 * 1024 * 1024,
        ),
    )(x_fm.astype(jnp.float32), w1, b1, w2, b2, w3, b3)


def dqn_forward(x, params, *, batch_tile=None):
    """Drop-in PyTorch-layout forward: x (B, 4) -> (B, 3) float32.
    The two transposes here are the only HBM traffic the kernel itself does not
    need; prefer dqn_forward_fm (or fold the output transpose into the
    consumer, e.g. argmax over axis 0 of (3, B)) on a hot path."""
    out_fm = dqn_forward_fm(x.T, prep_params(params), batch_tile=batch_tile)
    return out_fm.T


# ---------------------------------------------------------------------------
# Reference / init
# ---------------------------------------------------------------------------
def init_params(key):
    """PyTorch nn.Linear-style init: W (out, in), b (out,), U(+-1/sqrt(fan_in))."""
    dims = [(4, 24), (24, 32), (32, 3)]
    params = []
    for fan_in, fan_out in dims:
        key, kw, kb = jax.random.split(key, 3)
        bound = 1.0 / jnp.sqrt(jnp.float32(fan_in))
        w = jax.random.uniform(kw, (fan_out, fan_in), jnp.float32, -bound, bound)
        b = jax.random.uniform(kb, (fan_out,), jnp.float32, -bound, bound)
        params += [w, b]
    return tuple(params)


def dqn_reference(x, params):
    w1, b1, w2, b2, w3, b3 = params
    h1 = jnp.maximum(x @ w1.T + b1, 0.0)
    h2 = jnp.maximum(h1 @ w2.T + b2, 0.0)
    return h2 @ w3.T + b3


if __name__ == "__main__":
    key = jax.random.PRNGKey(0)
    kp, kx = jax.random.split(key)
    params = init_params(kp)
    prepped = prep_params(params)

    # PyTorch-layout path: B=256 -> 2 parallel grid steps of 128 lanes.
    B = 256
    x = jax.random.normal(kx, (B, 4), jnp.float32)
    out = jax.block_until_ready(dqn_forward(x, params))
    ref = dqn_reference(x, params)
    assert out.shape == (B, 3)
    assert jnp.allclose(out, ref, atol=2e-2, rtol=2e-2), float(
        jnp.max(jnp.abs(out - ref)))

    # Feature-major fast path with a ragged batch: exercises the masked
    # boundary-block writeback (no wrapper-side padding or slicing).
    Br = 200
    xr = jax.random.normal(jax.random.PRNGKey(1), (4, Br), jnp.float32)
    out_fm = jax.block_until_ready(dqn_forward_fm(xr, prepped))
    ref_fm = dqn_reference(xr.T, params).T
    assert out_fm.shape == (3, Br)
    assert jnp.allclose(out_fm, ref_fm, atol=2e-2, rtol=2e-2), float(
        jnp.max(jnp.abs(out_fm - ref_fm)))

    print("KERNEL_OK")
</pallas_src>

<mosaic_0001>
module attributes {stable_mosaic.version = 11 : i64} {
  func.func @dqn_kernel(%arg0: i32, %arg1: memref<4x128xf32, #tpu.memory_space<vmem>>, %arg2: memref<24x4xf32, #tpu.memory_space<vmem>>, %arg3: memref<24x1xf32, #tpu.memory_space<vmem>>, %arg4: memref<32x24xf32, #tpu.memory_space<vmem>>, %arg5: memref<32x1xf32, #tpu.memory_space<vmem>>, %arg6: memref<3x32xf32, #tpu.memory_space<vmem>>, %arg7: memref<3x1xf32, #tpu.memory_space<vmem>>, %arg8: memref<3x128xf32, #tpu.memory_space<vmem>>) attributes {dimension_semantics = [#tpu.dimension_semantics<parallel>], iteration_bounds = array<i64: 2>, scalar_prefetch = 0 : i64, scratch_operands = 0 : i64, tpu.core_type = #tpu.core_type<tc>, window_params = [{transform_indices = @transform_0, window_bounds = array<i64: 4, 128>}, {pipeline_mode = #tpu.pipeline_mode<synchronous>, transform_indices = @transform_1, window_bounds = array<i64: 24, 4>}, {pipeline_mode = #tpu.pipeline_mode<synchronous>, transform_indices = @transform_2, window_bounds = array<i64: 24, 1>}, {pipeline_mode = #tpu.pipeline_mode<synchronous>, transform_indices = @transform_3, window_bounds = array<i64: 32, 24>}, {pipeline_mode = #tpu.pipeline_mode<synchronous>, transform_indices = @transform_4, window_bounds = array<i64: 32, 1>}, {pipeline_mode = #tpu.pipeline_mode<synchronous>, transform_indices = @transform_5, window_bounds = array<i64: 3, 32>}, {pipeline_mode = #tpu.pipeline_mode<synchronous>, transform_indices = @transform_6, window_bounds = array<i64: 3, 1>}, {transform_indices = @transform_7, window_bounds = array<i64: 3, 128>}]} {
    %c0 = arith.constant 0 : index
    %c0_0 = arith.constant 0 : index
    %0 = vector.load %arg1[%c0, %c0_0] : memref<4x128xf32, #tpu.memory_space<vmem>>, vector<4x128xf32>
    %c0_1 = arith.constant 0 : index
    %c0_2 = arith.constant 0 : index
    %1 = vector.load %arg2[%c0_1, %c0_2] : memref<24x4xf32, #tpu.memory_space<vmem>>, vector<24x4xf32>
    %cst = arith.constant dense<0.000000e+00> : vector<24x128xf32>
    %2 = tpu.matmul %1, %0, %cst {dimension_numbers = #tpu.dot_dimension_numbers<[1], [0], [0], [1], [0, 0, 1, 1], [], []>} : vector<24x4xf32>, vector<4x128xf32>, vector<24x128xf32> -> vector<24x128xf32>
    %c0_3 = arith.constant 0 : index
    %c0_4 = arith.constant 0 : index
    %3 = vector.load %arg3[%c0_3, %c0_4] : memref<24x1xf32, #tpu.memory_space<vmem>>, vector<24x1xf32>
    %4 = vector.broadcast %3 : vector<24x1xf32> to vector<24x128xf32>
    %5 = arith.addf %2, %4 : vector<24x128xf32>
    %cst_5 = arith.constant 0.000000e+00 : f32
    %6 = vector.broadcast %cst_5 : f32 to vector<24x128xf32>
    %7 = arith.maximumf %5, %6 : vector<24x128xf32>
    %c0_6 = arith.constant 0 : index
    %c0_7 = arith.constant 0 : index
    %8 = vector.load %arg4[%c0_6, %c0_7] : memref<32x24xf32, #tpu.memory_space<vmem>>, vector<32x24xf32>
    %cst_8 = arith.constant dense<0.000000e+00> : vector<32x128xf32>
    %9 = tpu.matmul %8, %7, %cst_8 {dimension_numbers = #tpu.dot_dimension_numbers<[1], [0], [0], [1], [0, 0, 1, 1], [], []>} : vector<32x24xf32>, vector<24x128xf32>, vector<32x128xf32> -> vector<32x128xf32>
    %c0_9 = arith.constant 0 : index
    %c0_10 = arith.constant 0 : index
    %10 = vector.load %arg5[%c0_9, %c0_10] : memref<32x1xf32, #tpu.memory_space<vmem>>, vector<32x1xf32>
    %11 = vector.broadcast %10 : vector<32x1xf32> to vector<32x128xf32>
    %12 = arith.addf %9, %11 : vector<32x128xf32>
    %cst_11 = arith.constant 0.000000e+00 : f32
    %13 = vector.broadcast %cst_11 : f32 to vector<32x128xf32>
    %14 = arith.maximumf %12, %13 : vector<32x128xf32>
    %c0_12 = arith.constant 0 : index
    %c0_13 = arith.constant 0 : index
    %15 = vector.load %arg6[%c0_12, %c0_13] : memref<3x32xf32, #tpu.memory_space<vmem>>, vector<3x32xf32>
    %cst_14 = arith.constant dense<0.000000e+00> : vector<3x128xf32>
    %16 = tpu.matmul %15, %14, %cst_14 {dimension_numbers = #tpu.dot_dimension_numbers<[1], [0], [0], [1], [0, 0, 1, 1], [], []>} : vector<3x32xf32>, vector<32x128xf32>, vector<3x128xf32> -> vector<3x128xf32>
    %c0_15 = arith.constant 0 : index
    %c0_16 = arith.constant 0 : index
    %17 = vector.load %arg7[%c0_15, %c0_16] : memref<3x1xf32, #tpu.memory_space<vmem>>, vector<3x1xf32>
    %18 = vector.broadcast %17 : vector<3x1xf32> to vector<3x128xf32>
    %19 = arith.addf %16, %18 : vector<3x128xf32>
    %c0_17 = arith.constant 0 : index
    %c0_18 = arith.constant 0 : index
    %20 = vector.load %arg8[%c0_17, %c0_18] : memref<3x128xf32, #tpu.memory_space<vmem>>, vector<3x128xf32>
    tpu.vector_store %arg8[%c0_17, %c0_18], %19 {strides = array<i32>} : memref<3x128xf32, #tpu.memory_space<vmem>>, vector<3x128xf32>,
    return
  }
  func.func @transform_0(%arg0: i32) -> (i32, i32) {
    %c0_i32 = arith.constant 0 : i32
    %c0_i32_0 = arith.constant 0 : i32
    return %c0_i32, %arg0 : i32, i32
  }
  func.func @transform_1(%arg0: i32) -> (i32, i32) {
    %c0_i32 = arith.constant 0 : i32
    %c0_i32_0 = arith.constant 0 : i32
    %c0_i32_1 = arith.constant 0 : i32
    return %c0_i32, %c0_i32_0 : i32, i32
  }
  func.func @transform_2(%arg0: i32) -> (i32, i32) {
    %c0_i32 = arith.constant 0 : i32
    %c0_i32_0 = arith.constant 0 : i32
    %c0_i32_1 = arith.constant 0 : i32
    return %c0_i32, %c0_i32_0 : i32, i32
  }
  func.func @transform_3(%arg0: i32) -> (i32, i32) {
    %c0_i32 = arith.constant 0 : i32
    %c0_i32_0 = arith.constant 0 : i32
    %c0_i32_1 = arith.constant 0 : i32
    return %c0_i32, %c0_i32_0 : i32, i32
  }
  func.func @transform_4(%arg0: i32) -> (i32, i32) {
    %c0_i32 = arith.constant 0 : i32
    %c0_i32_0 = arith.constant 0 : i32
    %c0_i32_1 = arith.constant 0 : i32
    return %c0_i32, %c0_i32_0 : i32, i32
  }
  func.func @transform_5(%arg0: i32) -> (i32, i32) {
    %c0_i32 = arith.constant 0 : i32
    %c0_i32_0 = arith.constant 0 : i32
    %c0_i32_1 = arith.constant 0 : i32
    return %c0_i32, %c0_i32_0 : i32, i32
  }
  func.func @transform_6(%arg0: i32) -> (i32, i32) {
    %c0_i32 = arith.constant 0 : i32
    %c0_i32_0 = arith.constant 0 : i32
    %c0_i32_1 = arith.constant 0 : i32
    return %c0_i32, %c0_i32_0 : i32, i32
  }
  func.func @transform_7(%arg0: i32) -> (i32, i32) {
    %c0_i32 = arith.constant 0 : i32
    %c0_i32_0 = arith.constant 0 : i32
    return %c0_i32, %arg0 : i32, i32
  }
}

</mosaic_0001>

<llo_original>
// kernel: tpu_custom_call.1
$region0: #{tpu_custom_call.1}
  #allocation0 [shape = 'u32[]', space=smem, size = 0x4, offset = 0x4, fixed_abs, tag = 'smem constant byte address 0x4 - core index']
  #allocation1 [shape = 'u32[72,128]{1,0:T(1,128)}', space=vmem, size = 0x9000, scoped, tag = 'internal scratch']
  %s0 = inlined_call_operand.vmem [shape: f32[4,256], index: 0, kind: input, shape index: {}]
  %s1 = inlined_call_operand.vmem [shape: f32[24,4], index: 1, kind: input, shape index: {}]
  %s2 = inlined_call_operand.vmem [shape: f32[24,1], index: 2, kind: input, shape index: {}]
  %s3 = inlined_call_operand.vmem [shape: f32[32,24], index: 3, kind: input, shape index: {}]
  %s4 = inlined_call_operand.vmem [shape: f32[32,1], index: 4, kind: input, shape index: {}]
  %s5 = inlined_call_operand.vmem [shape: f32[3,32], index: 5, kind: input, shape index: {}]
  %s6 = inlined_call_operand.vmem [shape: f32[3,1], index: 6, kind: input, shape index: {}]
  %s7 = inlined_call_operand.hbm [shape: f32[3,256], index: 7, kind: output, shape index: {}]
  %s8 = sld [smem:[#allocation0]]
  $region61: #{tpu_custom_call.1} parent=0
    _
  %s10 = ssub.s32 1, %s8
  %s11 = scalar_select 0, %s10, %s8
  $region1: #{tpu_custom_call.1} parent=0
    #allocation2 [shape = 'u8[4096]{0}', space=vmem, size = 0x1000, scoped, tag = 'output window, operand 0']
    #allocation3 [shape = 's32[2]{0}', space=sflag, size = 0x8, scoped, tag = 'scoped memory for tpu_custom_call.1']
    %12 = vsyncpa [#allocation3], 0
    %s13 = scalar_lea.sflag [#allocation3], 1
    %14 = vsyncpa %s13, 0
    loop: start=0, step=1, limit=4
    $region2: #{tpu_custom_call.1} parent=1 // loop_pre_header
      _
    $region3: #{tpu_custom_call.1} parent=1 // loop_header
      %s16 = sphi 0, %s20
      %p17 = scmp.ge.s32.totalorder %s16, 4
      %s26 = sphi 0, %s28
      %s29 = sphi 0, %s26
      %s30 = sphi 0, %s29
      %s46 = sphi 0, %s30
      %s50 = sphi 0, %s50
      %s52 = sphi 0, %s50
      %s53 = sphi 0, %s52
      %s67 = sphi 0, %s53
      %s71 = sphi 0, %s71
      %s73 = sphi 0, %s71
      %s74 = sphi 0, %s73
      %s88 = sphi 0, %s74
      %s92 = sphi 0, %s92
      %s94 = sphi 0, %s92
      %s95 = sphi 0, %s94
      %s109 = sphi 0, %s95
      %s113 = sphi 0, %s113
      %s115 = sphi 0, %s113
      %s116 = sphi 0, %s115
      %s130 = sphi 0, %s116
      %s134 = sphi 0, %s134
      %s136 = sphi 0, %s134
      %s137 = sphi 0, %s136
      %s151 = sphi 0, %s137
      %s155 = sphi 0, %s155
      %s157 = sphi 0, %s155
      %s158 = sphi 0, %s157
      %s172 = sphi 0, %s158
      %s178 = sphi 0, %s180
      %s181 = sphi 0, %s178
      %s182 = sphi 0, %s181
      %s198 = sphi 0, %s182
    $region4: #{tpu_custom_call.1} parent=1 // loop_header_branch
      %19 = sbr.rel (%p17) target = $region8
    $region5: #{tpu_custom_call.1} parent=1 // loop_body
      %s21 = ssub.s32 %s16, 1
      %s22 = ssub.s32 %s16, 2
      %s23 = sadd.s32 %s16, 1
      %s24 = ssub.s32 %s16, %s23
      %p25 = scmp.eq.s32.totalorder %s24, 0
      %s27 = sadd.s32 %s26, 1
      %s28 = scalar_select %p25, %s26, %s27
      %p31 = pneg %p25
      %p32 = scmp.eq.s32.totalorder %s16, 1
      %p33 = por %p31, %p32
      %p34 = scmp.ne.s32.totalorder %s26, %s29
      %p35 = scmp.eq.s32.totalorder %s16, 0
      %p36 = por %p34, %p35
      %p37 = scmp.ne.s32.totalorder %s26, %s29
      %p38 = scmp.eq.s32.totalorder %s21, 1
      %p39 = por %p37, %p38
      %p40 = scmp.ne.s32.totalorder %s29, %s30
      %p41 = scmp.eq.s32.totalorder %s21, 0
      %p42 = por %p40, %p41
      %p43 = scmp.ne.s32.totalorder %s29, %s30
      %p44 = scmp.eq.s32.totalorder %s22, 1
      %p45 = por %p43, %p44
      %p47 = scmp.ne.s32.totalorder %s30, %s46
      %p48 = scmp.eq.s32.totalorder %s22, 0
      %p49 = por %p47, %p48
      %s51 = sadd.s32 %s50, 1
      %p54 = scmp.eq.s32.totalorder %s16, 1
      %p55 = scmp.ne.s32.totalorder %s50, %s52
      %p56 = scmp.eq.s32.totalorder %s16, 0
      %p57 = por %p55, %p56
      %p58 = scmp.ne.s32.totalorder %s50, %s52
      %p59 = scmp.eq.s32.totalorder %s21, 1
      %p60 = por %p58, %p59
      %p61 = scmp.ne.s32.totalorder %s52, %s53
      %p62 = scmp.eq.s32.totalorder %s21, 0
      %p63 = por %p61, %p62
      %p64 = scmp.ne.s32.totalorder %s52, %s53
      %p65 = scmp.eq.s32.totalorder %s22, 1
      %p66 = por %p64, %p65
      %p68 = scmp.ne.s32.totalorder %s53, %s67
      %p69 = scmp.eq.s32.totalorder %s22, 0
      %p70 = por %p68, %p69
      %s72 = sadd.s32 %s71, 1
      %p75 = scmp.eq.s32.totalorder %s16, 1
      %p76 = scmp.ne.s32.totalorder %s71, %s73
      %p77 = scmp.eq.s32.totalorder %s16, 0
      %p78 = por %p76, %p77
      %p79 = scmp.ne.s32.totalorder %s71, %s73
      %p80 = scmp.eq.s32.totalorder %s21, 1
      %p81 = por %p79, %p80
      %p82 = scmp.ne.s32.totalorder %s73, %s74
      %p83 = scmp.eq.s32.totalorder %s21, 0
      %p84 = por %p82, %p83
      %p85 = scmp.ne.s32.totalorder %s73, %s74
      %p86 = scmp.eq.s32.totalorder %s22, 1
      %p87 = por %p85, %p86
      %p89 = scmp.ne.s32.totalorder %s74, %s88
      %p90 = scmp.eq.s32.totalorder %s22, 0
      %p91 = por %p89, %p90
      %s93 = sadd.s32 %s92, 1
      %p96 = scmp.eq.s32.totalorder %s16, 1
      %p97 = scmp.ne.s32.totalorder %s92, %s94
      %p98 = scmp.eq.s32.totalorder %s16, 0
      %p99 = por %p97, %p98
      %p100 = scmp.ne.s32.totalorder %s92, %s94
      %p101 = scmp.eq.s32.totalorder %s21, 1
      %p102 = por %p100, %p101
      %p103 = scmp.ne.s32.totalorder %s94, %s95
      %p104 = scmp.eq.s32.totalorder %s21, 0
      %p105 = por %p103, %p104
      %p106 = scmp.ne.s32.totalorder %s94, %s95
      %p107 = scmp.eq.s32.totalorder %s22, 1
      %p108 = por %p106, %p107
      %p110 = scmp.ne.s32.totalorder %s95, %s109
      %p111 = scmp.eq.s32.totalorder %s22, 0
      %p112 = por %p110, %p111
      %s114 = sadd.s32 %s113, 1
      %p117 = scmp.eq.s32.totalorder %s16, 1
      %p118 = scmp.ne.s32.totalorder %s113, %s115
      %p119 = scmp.eq.s32.totalorder %s16, 0
      %p120 = por %p118, %p119
      %p121 = scmp.ne.s32.totalorder %s113, %s115
      %p122 = scmp.eq.s32.totalorder %s21, 1
      %p123 = por %p121, %p122
      %p124 = scmp.ne.s32.totalorder %s115, %s116
      %p125 = scmp.eq.s32.totalorder %s21, 0
      %p126 = por %p124, %p125
      %p127 = scmp.ne.s32.totalorder %s115, %s116
      %p128 = scmp.eq.s32.totalorder %s22, 1
      %p129 = por %p127, %p128
      %p131 = scmp.ne.s32.totalorder %s116, %s130
      %p132 = scmp.eq.s32.totalorder %s22, 0
      %p133 = por %p131, %p132
      %s135 = sadd.s32 %s134, 1
      %p138 = scmp.eq.s32.totalorder %s16, 1
      %p139 = scmp.ne.s32.totalorder %s134, %s136
      %p140 = scmp.eq.s32.totalorder %s16, 0
      %p141 = por %p139, %p140
      %p142 = scmp.ne.s32.totalorder %s134, %s136
      %p143 = scmp.eq.s32.totalorder %s21, 1
      %p144 = por %p142, %p143
      %p145 = scmp.ne.s32.totalorder %s136, %s137
      %p146 = scmp.eq.s32.totalorder %s21, 0
      %p147 = por %p145, %p146
      %p148 = scmp.ne.s32.totalorder %s136, %s137
      %p149 = scmp.eq.s32.totalorder %s22, 1
      %p150 = por %p148, %p149
      %p152 = scmp.ne.s32.totalorder %s137, %s151
      %p153 = scmp.eq.s32.totalorder %s22, 0
      %p154 = por %p152, %p153
      %s156 = sadd.s32 %s155, 1
      %p159 = scmp.eq.s32.totalorder %s16, 1
      %p160 = scmp.ne.s32.totalorder %s155, %s157
      %p161 = scmp.eq.s32.totalorder %s16, 0
      %p162 = por %p160, %p161
      %p163 = scmp.ne.s32.totalorder %s155, %s157
      %p164 = scmp.eq.s32.totalorder %s21, 1
      %p165 = por %p163, %p164
      %p166 = scmp.ne.s32.totalorder %s157, %s158
      %p167 = scmp.eq.s32.totalorder %s21, 0
      %p168 = por %p166, %p167
      %p169 = scmp.ne.s32.totalorder %s157, %s158
      %p170 = scmp.eq.s32.totalorder %s22, 1
      %p171 = por %p169, %p170
      %p173 = scmp.ne.s32.totalorder %s158, %s172
      %p174 = scmp.eq.s32.totalorder %s22, 0
      %p175 = por %p173, %p174
      %s176 = ssub.s32 %s16, %s23
      %p177 = scmp.eq.s32.totalorder %s176, 0
      %s179 = sadd.s32 %s178, 1
      %s180 = scalar_select %p177, %s178, %s179
      %p183 = pneg %p177
      %p184 = scmp.eq.s32.totalorder %s16, 1
      %p185 = por %p183, %p184
      %p186 = scmp.ne.s32.totalorder %s178, %s181
      %p187 = scmp.eq.s32.totalorder %s16, 0
      %p188 = por %p186, %p187
      %p189 = scmp.ne.s32.totalorder %s178, %s181
      %p190 = scmp.eq.s32.totalorder %s21, 1
      %p191 = por %p189, %p190
      %p192 = scmp.ne.s32.totalorder %s181, %s182
      %p193 = scmp.eq.s32.totalorder %s21, 0
      %p194 = por %p192, %p193
      %p195 = scmp.ne.s32.totalorder %s181, %s182
      %p196 = scmp.eq.s32.totalorder %s22, 1
      %p197 = por %p195, %p196
      %p199 = scmp.ne.s32.totalorder %s182, %s198
      %p200 = scmp.eq.s32.totalorder %s22, 0
      %p201 = por %p199, %p200
      %p202 = scmp.le.s32.totalorder 1, %s16
      %p203 = scmp.lt.s32.totalorder %s16, 3
      %p204 = pnand %p202, %p203
      %p205 = pneg %p204
      // Predicated region
      $region9: #{tpu_custom_call.1} parent=5 // pred_check
        _
      $region10: #{tpu_custom_call.1} parent=5 // pred_check_branch
        %207 = sbr.rel (%p204) target = $region12
      $region11: #{tpu_custom_call.1} parent=5 // pred_region
        %s208 = ssub.s32 %s16, 1
        // Predicated region
        $region13: #{tpu_custom_call.1} parent=11 // pred_check
          %p209 = pneg %p63
        $region14: #{tpu_custom_call.1} parent=11 // pred_check_branch
          %211 = sbr.rel (%p209) target = $region16
        $region15: #{tpu_custom_call.1} parent=11 // pred_region
          _
        $region16: #{tpu_custom_call.1} parent=11 // pred_fallthru
          _
        // Predicated region
        $region17: #{tpu_custom_call.1} parent=11 // pred_check
          %p212 = pneg %p84
        $region18: #{tpu_custom_call.1} parent=11 // pred_check_branch
          %214 = sbr.rel (%p212) target = $region20
        $region19: #{tpu_custom_call.1} parent=11 // pred_region
          _
        $region20: #{tpu_custom_call.1} parent=11 // pred_fallthru
          _
        // Predicated region
        $region21: #{tpu_custom_call.1} parent=11 // pred_check
          %p215 = pneg %p105
        $region22: #{tpu_custom_call.1} parent=11 // pred_check_branch
          %217 = sbr.rel (%p215) target = $region24
        $region23: #{tpu_custom_call.1} parent=11 // pred_region
          _
        $region24: #{tpu_custom_call.1} parent=11 // pred_fallthru
          _
        // Predicated region
        $region25: #{tpu_custom_call.1} parent=11 // pred_check
          %p218 = pneg %p126
        $region26: #{tpu_custom_call.1} parent=11 // pred_check_branch
          %220 = sbr.rel (%p218) target = $region28
        $region27: #{tpu_custom_call.1} parent=11 // pred_region
          _
        $region28: #{tpu_custom_call.1} parent=11 // pred_fallthru
          _
        // Predicated region
        $region29: #{tpu_custom_call.1} parent=11 // pred_check
          %p221 = pneg %p147
        $region30: #{tpu_custom_call.1} parent=11 // pred_check_branch
          %223 = sbr.rel (%p221) target = $region32
        $region31: #{tpu_custom_call.1} parent=11 // pred_region
          _
        $region32: #{tpu_custom_call.1} parent=11 // pred_fallthru
          _
        // Predicated region
        $region33: #{tpu_custom_call.1} parent=11 // pred_check
          %p224 = pneg %p168
        $region34: #{tpu_custom_call.1} parent=11 // pred_check_branch
          %226 = sbr.rel (%p224) target = $region36
        $region35: #{tpu_custom_call.1} parent=11 // pred_region
          _
        $region36: #{tpu_custom_call.1} parent=11 // pred_fallthru
          _
      $region12: #{tpu_custom_call.1} parent=5 // pred_fallthru
        _
      %p227 = scmp.lt.s32.totalorder %s16, 2
      // Predicated region
      $region37: #{tpu_custom_call.1} parent=5 // pred_check
        %p228 = pneg %p227
      $region38: #{tpu_custom_call.1} parent=5 // pred_check_branch
        %230 = sbr.rel (%p228) target = $region40
      $region39: #{tpu_custom_call.1} parent=5 // pred_region
        // Predicated region
        $region41: #{tpu_custom_call.1} parent=39 // pred_check
          %p231 = pneg %p36
        $region42: #{tpu_custom_call.1} parent=39 // pred_check_branch
          %233 = sbr.rel (%p231) target = $region44
        $region43: #{tpu_custom_call.1} parent=39 // pred_region
          %p234 = scmp.lt.s32.totalorder %s16, 1
          %s235 = scalar_select %p234, %s16, 1
          %s236 = smul.addr %s235, 4
          %s237 = scalar_lea.vmem %s0, %s236
        $region44: #{tpu_custom_call.1} parent=39 // pred_fallthru
          _
      $region40: #{tpu_custom_call.1} parent=5 // pred_fallthru
        _
      %p238 = scmp.le.s32.totalorder 1, %s16
      %p239 = scmp.lt.s32.totalorder %s16, 3
      %p240 = pnand %p238, %p239
      %p241 = pneg %p240
      // Predicated region
      $region45: #{tpu_custom_call.1} parent=5 // pred_check
        _
      $region46: #{tpu_custom_call.1} parent=5 // pred_check_branch
        %243 = sbr.rel (%p240) target = $region48
      $region47: #{tpu_custom_call.1} parent=5 // pred_region
        %s244 = ssub.s32 %s16, 1
        %p245 = scmp.lt.s32.totalorder %s21, 1
        %s246 = scalar_select %p245, %s21, 1
        %s247 = smul.addr %s246, 4
        %s248 = scalar_lea.vmem %s0, %s247
        %p249 = pneg %p42
        %p250 = pneg %p39
        %p251 = pneg %p63
        %p252 = pneg %p60
        %p253 = pneg %p84
        %p254 = pneg %p81
        %p255 = pneg %p105
        %p256 = pneg %p102
        %p257 = pneg %p126
        %p258 = pneg %p123
        %p259 = pneg %p147
        %p260 = pneg %p144
        %p261 = pneg %p168
        %p262 = pneg %p165
        %p263 = pneg %p194
        %p264 = pneg %p191
        %s265 = sand.u32 %s181, 1
        %s266 = scalar_lea.sflag [#allocation3], %s265
        %s267 = sand.u32 %s181, 1
        %s268 = smul.addr %s267, 4
        %s269 = scalar_lea.vmem [#allocation2], %s268
        %p270 = scmp.lt.s32.totalorder %s21, 1
        %s271 = scalar_select %p270, %s21, 1
        %s272 = smul.addr %s271, 4
        %s273 = scalar_lea.vmem %s0, %s272
        %v274 = vld [vmem:[%s273] sm:$0xf]
        %v275 = vld [vmem:[%s1] sm:$0xff]
        %v276 = vld [vmem:[%s1 + $0x8] sm:$0xff]
        %v277 = vld [vmem:[%s1 + $0x10] sm:$0xff]
        %v278 = vld [vmem:[%s2] sm:$0xff]
        %v279 = vld [vmem:[%s2 + $0x8] sm:$0xff]
        %v280 = vld [vmem:[%s2 + $0x10] sm:$0xff]
        %282 = vset.pattern.permute.xlu0 0
        %283 = vperm.xlu0 %282, %v278
        %v284 = vpop.permute.xlu0 %283
        %287 = vset.pattern.permute.xlu0 0
        %288 = vperm.xlu0 %287, %v279
        %v289 = vpop.permute.xlu0 %288
        %292 = vset.pattern.permute.xlu0 0
        %293 = vperm.xlu0 %292, %v280
        %v294 = vpop.permute.xlu0 %293
        %vm296 = vcmask 31744
        %v298 = vsel %vm296, %v275, 0
        %v301 = vsel %vm296, %v276, 0
        %v304 = vsel %vm296, %v277, 0
        %vm306 = vcmask 1043456
        %v308 = vsel %vm306, %v274, 0
        %310 = vmatpush.msra.mxu0 0.0
        %311 = vmatpush.msra.mxu0 0.0
        %312 = vmatpush.msra.mxu0 0.0
        %313 = vmatpush.msra.mxu0 0.0
        %314 = vmatpush.msra.mxu0 0.0
        %315 = vmatpush.msra.mxu0 0.0
        %316 = vmatpush.msra.mxu0 0.0
        %317 = vmatpush.msra.mxu0 0.0
        %318 = vmatpush.msra.mxu0 0.0
        %319 = vmatpush.msra.mxu0 0.0
        %320 = vmatpush.msra.mxu0 0.0
        %321 = vmatpush.msra.mxu0 0.0
        %322 = vmatpush.msra.mxu0 0.0
        %323 = vmatpush.msra.mxu0 0.0
        %324 = vmatpush.msra.mxu0 0.0
        %325 = vmatpush.msra.mxu0 %v308
        %326 = vmatmul.f32.gmra.mxu0 %v298
        %v327 = vpop.f32.mrf.mxu0
        %v328 = vadd.f32 %v284, %v327
        %329 = vmatmul.f32.gmra.mxu0 %v301
        %v330 = vpop.f32.mrf.mxu0
        %v331 = vadd.f32 %v289, %v330
        %332 = vmatmul.f32.gmra.mxu0 %v304
        %v333 = vpop.f32.mrf.mxu0
        %v334 = vadd.f32 %v294, %v333
        %335 = vdwg.mxu0
        %v336 = vmax.f32 %v328, 0.0
        %v337 = vmax.f32 %v331, 0.0
        %v338 = vmax.f32 %v334, 0.0
        %v339 = vld [vmem:[%s3] sm:$0xff]
        %v340 = vld [vmem:[%s3 + $0x8] sm:$0xff]
        %v341 = vld [vmem:[%s3 + $0x10] sm:$0xff]
        %v342 = vld [vmem:[%s3 + $0x18] sm:$0xff]
        %v343 = vld [vmem:[%s4] sm:$0xff]
        %v344 = vld [vmem:[%s4 + $0x8] sm:$0xff]
        %v345 = vld [vmem:[%s4 + $0x10] sm:$0xff]
        %v346 = vld [vmem:[%s4 + $0x18] sm:$0xff]
        %348 = vset.pattern.permute.xlu0 0
        %349 = vperm.xlu0 %348, %v343
        %v350 = vpop.permute.xlu0 %349
        %353 = vset.pattern.permute.xlu0 0
        %354 = vperm.xlu0 %353, %v344
        %v355 = vpop.permute.xlu0 %354
        %358 = vset.pattern.permute.xlu0 0
        %359 = vperm.xlu0 %358, %v345
        %v360 = vpop.permute.xlu0 %359
        %363 = vset.pattern.permute.xlu0 0
        %364 = vperm.xlu0 %363, %v346
        %v365 = vpop.permute.xlu0 %364
        %vm367 = vcmask 195584
        %v369 = vsel %vm367, %v339, 0
        %v372 = vsel %vm367, %v340, 0
        %v375 = vsel %vm367, %v341, 0
        %v378 = vsel %vm367, %v342, 0
        %380 = vmatpush.msra.mxu0 0.0
        %381 = vmatpush.msra.mxu0 0.0
        %382 = vmatpush.msra.mxu0 0.0
        %383 = vmatpush.msra.mxu0 0.0
        %384 = vmatpush.msra.mxu0 0.0
        %385 = vmatpush.msra.mxu0 0.0
        %386 = vmatpush.msra.mxu0 0.0
        %387 = vmatpush.msra.mxu0 0.0
        %388 = vmatpush.msra.mxu0 0.0
        %389 = vmatpush.msra.mxu0 0.0
        %390 = vmatpush.msra.mxu0 0.0
        %391 = vmatpush.msra.mxu0 0.0
        %392 = vmatpush.msra.mxu0 0.0
        %393 = vmatpush.msra.mxu0 %v338
        %394 = vmatpush.msra.mxu0 %v337
        %395 = vmatpush.msra.mxu0 %v336
        %396 = vmatmul.f32.gmra.mxu0 %v369
        %v397 = vpop.f32.mrf.mxu0
        %v398 = vadd.f32 %v350, %v397
        %399 = vmatmul.f32.gmra.mxu0 %v372
        %v400 = vpop.f32.mrf.mxu0
        %v401 = vadd.f32 %v355, %v400
        %402 = vmatmul.f32.gmra.mxu0 %v375
        %v403 = vpop.f32.mrf.mxu0
        %v404 = vadd.f32 %v360, %v403
        %405 = vmatmul.f32.gmra.mxu0 %v378
        %v406 = vpop.f32.mrf.mxu0
        %v407 = vadd.f32 %v365, %v406
        %408 = vdwg.mxu0
        %v409 = vmax.f32 %v398, 0.0
        %v410 = vmax.f32 %v401, 0.0
        %v411 = vmax.f32 %v404, 0.0
        %v412 = vmax.f32 %v407, 0.0
        %v413 = vld [vmem:[%s5] sm:$0x7]
        %v414 = vld [vmem:[%s6] sm:$0x7]
        %416 = vset.pattern.permute.xlu0 0
        %417 = vperm.xlu0 %416, %v414
        %v418 = vpop.permute.xlu0 %417
        %vm420 = vcmask 261120
        %v422 = vsel %vm420, %v413, 0
        %424 = vmatpush.msra.mxu0 0.0
        %425 = vmatpush.msra.mxu0 0.0
        %426 = vmatpush.msra.mxu0 0.0
        %427 = vmatpush.msra.mxu0 0.0
        %428 = vmatpush.msra.mxu0 0.0
        %429 = vmatpush.msra.mxu0 0.0
        %430 = vmatpush.msra.mxu0 0.0
        %431 = vmatpush.msra.mxu0 0.0
        %432 = vmatpush.msra.mxu0 0.0
        %433 = vmatpush.msra.mxu0 0.0
        %434 = vmatpush.msra.mxu0 0.0
        %435 = vmatpush.msra.mxu0 0.0
        %436 = vmatpush.msra.mxu0 %v412
        %437 = vmatpush.msra.mxu0 %v411
        %438 = vmatpush.msra.mxu0 %v410
        %439 = vmatpush.msra.mxu0 %v409
        %440 = vmatmul.f32.gmra.mxu0 %v422
        %v441 = vpop.f32.mrf.mxu0
        %v442 = vadd.f32 %v418, %v441
        %443 = vdwg.mxu0
        %444 = vst [vmem:[%s269] sm:$0x7] %v442
        %s445 = sand.u32 %s181, 1
        %s446 = scalar_lea.sflag [#allocation3], %s445
        %s447 = sand.u32 %s181, 1
        %s448 = smul.addr %s447, 4
        %s449 = scalar_lea.vmem [#allocation2], %s448
        // Predicated region
        $region49: #{tpu_custom_call.1} parent=47 // pred_check
          %p450 = pneg %p191
        $region50: #{tpu_custom_call.1} parent=47 // pred_check_branch
          %452 = sbr.rel (%p450) target = $region52
        $region51: #{tpu_custom_call.1} parent=47 // pred_region
          %454 = vsyncadd %s446, 0
          %s455 = smul.addr %s21, 4
          %s456 = scalar_lea.hbm %s7, %s455
          %s458 = sshll.u32 %s449, 4
          %s459 = int_to_ptr.vmem [resolvable:$true] %s458
          %s460 = sshll.u32 %s456, 4
          %s461 = int_to_ptr.hbm [resolvable:$true] %s460
          %463 = dma.vmem_to_hbm [thread:$0]  %s459, 64, %s461, %s446
        $region52: #{tpu_custom_call.1} parent=47 // pred_fallthru
          _
      $region48: #{tpu_custom_call.1} parent=5 // pred_fallthru
        _
      %p464 = scmp.le.s32.totalorder 2, %s16
      // Predicated region
      $region53: #{tpu_custom_call.1} parent=5 // pred_check
        %p465 = pneg %p464
      $region54: #{tpu_custom_call.1} parent=5 // pred_check_branch
        %467 = sbr.rel (%p465) target = $region56
      $region55: #{tpu_custom_call.1} parent=5 // pred_region
        %s468 = ssub.s32 %s16, 2
        // Predicated region
        $region57: #{tpu_custom_call.1} parent=55 // pred_check
          %p469 = pneg %p197
        $region58: #{tpu_custom_call.1} parent=55 // pred_check_branch
          %471 = sbr.rel (%p469) target = $region60
        $region59: #{tpu_custom_call.1} parent=55 // pred_region
          %s472 = sand.u32 %s182, 1
          %s473 = scalar_lea.sflag [#allocation3], %s472
          %s474 = sand.u32 %s182, 1
          %s475 = smul.addr %s474, 4
          %s476 = scalar_lea.vmem [#allocation2], %s475
          %478 = dma.done %s473, 64
        $region60: #{tpu_custom_call.1} parent=55 // pred_fallthru
          _
      $region56: #{tpu_custom_call.1} parent=5 // pred_fallthru
        _
    $region6: #{tpu_custom_call.1} parent=1 // loop_footer
      %s20 = sadd.s32 1, %s16
    $region7: #{tpu_custom_call.1} parent=1 // loop_footer_branch
      %15 = sbr.rel target = $region3
    $region8: #{tpu_custom_call.1} parent=1 // loop_exit
      _
    %479 = vsyncpa [#allocation3], 1
    %s480 = scalar_lea.sflag [#allocation3], 1
    %481 = vsyncpa %s480, 1

</llo_original>
